<compile_context>
chip_gen: v5e
topology: v5e:2x2
jax: 0.10.0
libtpu: 0.0.40
codegen_flags: <defaults>
</compile_context>

<pallas_src>
import jax
import jax.numpy as jnp
from jax.experimental import pallas as pl
from jax.experimental.pallas import tpu as pltpu

EPS = 1e-5


# --------------------------------------------------------------------------- #
# VMEM budgeting (generation-aware)
# --------------------------------------------------------------------------- #
def _vmem_budget_and_limit():
    """Returns (double-buffered tile byte budget, scoped vmem_limit_bytes)."""
    cap = 64 * 1024 * 1024  # conservative default = v7x physical VMEM per core
    try:
        info = pltpu.get_tpu_info()
        cap = int(getattr(info, "vmem_capacity_bytes", cap))
    except Exception:
        pass
    budget = (cap * 3) // 8                                  # ~24 MiB v7x, ~48 MiB v5e/v6e
    limit = min((cap * 3) // 4, 96 * 1024 * 1024)            # headroom below physical cap
    return budget, limit


def _choose_tile(hw, per_col_bytes, budget):
    """Largest 128-aligned spatial tile whose double-buffered footprint fits budget."""
    max_cols = max(budget // per_col_bytes, 128)
    if hw <= max_cols:
        return hw  # block == full array dim is always legal (no 128 constraint)
    return int((max_cols // 128) * 128)


# --------------------------------------------------------------------------- #
# Kernels
# --------------------------------------------------------------------------- #
def _make_stats_kernel(hw, tile):
    """Pass 1: per-batch partial sum_x and Gram(x) accumulators (y never formed)."""
    masked = (hw % tile) != 0  # static: only emit tail masking when needed

    def kernel(x_ref, sumx_ref, gram_ref):
        # x_ref: (1, Cin, T); sumx_ref: (1, Cin, 1); gram_ref: (1, Cin, Cin).
        # Accumulators are resident across the (arbitrary) tile axis; each batch
        # index owns its own partial block (parallel axis -> megacore friendly).
        @pl.when(pl.program_id(1) == 0)
        def _():
            sumx_ref[...] = jnp.zeros_like(sumx_ref)
            gram_ref[...] = jnp.zeros_like(gram_ref)

        x = x_ref[0]  # (Cin, T)
        if masked:
            remaining = hw - pl.program_id(1) * tile
            col = jax.lax.broadcasted_iota(jnp.int32, x.shape, 1)
            x = jnp.where(col < remaining, x, 0.0)

        sumx_ref[0] += jnp.sum(x, axis=1, keepdims=True)
        # Gram contraction over the spatial axis: (Cin,T) x (Cin,T) -> (Cin,Cin).
        gram_ref[0] += jax.lax.dot_general(
            x, x,
            dimension_numbers=(((1,), (1,)), ((), ())),
            preferred_element_type=jnp.float32)

    return kernel


def _conv_bn_relu_kernel(x_ref, w_ref, scale_ref, shift_ref, o_ref):
    # Recompute the conv tile and apply the folded BN affine + ReLU.
    # Output tile (1, Cout, T) is lane-dense over the spatial axis; partial
    # trailing blocks (hw % tile != 0) are handled by Pallas-masked stores.
    y = jnp.dot(w_ref[...], x_ref[0], preferred_element_type=jnp.float32)  # (Cout, T)
    o_ref[0] = jnp.maximum(y * scale_ref[...] + shift_ref[...], 0.0)


# --------------------------------------------------------------------------- #
# Wrapper
# --------------------------------------------------------------------------- #
def conv_bn_relu(x_nchw, weight, bias, gamma, beta):
    """1x1 conv (stride 1, pad 0) + training-mode BatchNorm2d + ReLU.

    x_nchw: (N, Cin, H, W); weight: (Cout, Cin) or (Cout, Cin, 1, 1).
    `bias` is accepted for API parity but unused: a constant per-channel bias
    is cancelled exactly by the training-mode BN mean subtraction.  (This would
    NOT hold for eval-mode / running statistics.)
    """
    del bias
    if weight.ndim == 4:  # (Cout, Cin, 1, 1) PyTorch layout
        weight = weight.reshape(weight.shape[0], weight.shape[1])

    n, cin, h, w = x_nchw.shape
    cout = weight.shape[0]
    hw = h * w
    m_total = n * hw
    itemsize = 4

    x3 = x_nchw.reshape(n, cin, hw).astype(jnp.float32)  # free reshape, no transpose
    w2 = weight.astype(jnp.float32)                      # (Cout, Cin)

    budget, vmem_limit = _vmem_budget_and_limit()

    # ---- Pass 1: x-moments (sum_x, Gram) with per-batch partial accumulators ----
    tile1 = _choose_tile(hw, per_col_bytes=2 * cin * itemsize, budget=budget)
    tiles1 = pl.cdiv(hw, tile1)
    stats_cost = pl.CostEstimate(
        flops=2 * m_total * cin * cin + m_total * cin,
        transcendentals=0,
        bytes_accessed=(m_total * cin + n * (cin + cin * cin)) * itemsize,
    )
    sumx_part, gram_part = pl.pallas_call(
        _make_stats_kernel(hw, tile1),
        out_shape=(
            jax.ShapeDtypeStruct((n, cin, 1), jnp.float32),
            jax.ShapeDtypeStruct((n, cin, cin), jnp.float32),
        ),
        grid_spec=pltpu.PrefetchScalarGridSpec(
            num_scalar_prefetch=0,
            grid=(n, tiles1),
            in_specs=[
                pl.BlockSpec((1, cin, tile1), lambda i, j: (i, 0, j)),
            ],
            out_specs=[
                pl.BlockSpec((1, cin, 1), lambda i, j: (i, 0, 0)),
                pl.BlockSpec((1, cin, cin), lambda i, j: (i, 0, 0)),
            ],
        ),
        compiler_params=pltpu.CompilerParams(
            # batch axis parallel (per-batch partials -> both v7x cores busy),
            # tile axis sequential (resident accumulator).
            dimension_semantics=("parallel", "arbitrary"),
            vmem_limit_bytes=vmem_limit,
        ),
        cost_estimate=stats_cost,
    )(x3)

    # ---- Fold batch statistics into a single per-channel affine (host-side) ----
    sum_x = jnp.sum(sumx_part, axis=0)            # (Cin, 1)
    gram = jnp.sum(gram_part, axis=0)             # (Cin, Cin)
    mean_x = sum_x / float(m_total)
    mean_y = jnp.dot(w2, mean_x)                  # (Cout, 1)
    ey2 = jnp.sum(jnp.dot(w2, gram) * w2, axis=1, keepdims=True) / float(m_total)
    var = jnp.maximum(ey2 - mean_y * mean_y, 0.0)  # clamp cancellation
    scale = gamma.reshape(cout, 1).astype(jnp.float32) * jax.lax.rsqrt(var + EPS)
    shift = beta.reshape(cout, 1).astype(jnp.float32) - mean_y * scale

    # ---- Pass 2: fused conv + BN-affine + ReLU, lane-dense output --------------
    tile2 = _choose_tile(hw, per_col_bytes=2 * (cin + cout) * itemsize, budget=budget)
    tiles2 = pl.cdiv(hw, tile2)
    fused_cost = pl.CostEstimate(
        flops=2 * m_total * cin * cout + 3 * m_total * cout,
        transcendentals=0,
        bytes_accessed=(m_total * cin + cout * cin + 2 * cout
                        + m_total * cout) * itemsize,
    )
    out3 = pl.pallas_call(
        _conv_bn_relu_kernel,
        out_shape=jax.ShapeDtypeStruct((n, cout, hw), jnp.float32),
        grid_spec=pltpu.PrefetchScalarGridSpec(
            num_scalar_prefetch=0,
            grid=(n, tiles2),
            in_specs=[
                pl.BlockSpec((1, cin, tile2), lambda i, j: (i, 0, j)),
                pl.BlockSpec((cout, cin), lambda i, j: (0, 0)),
                pl.BlockSpec((cout, 1), lambda i, j: (0, 0)),
                pl.BlockSpec((cout, 1), lambda i, j: (0, 0)),
            ],
            out_specs=pl.BlockSpec((1, cout, tile2), lambda i, j: (i, 0, j)),
        ),
        compiler_params=pltpu.CompilerParams(
            dimension_semantics=("parallel", "parallel"),
            vmem_limit_bytes=vmem_limit,
        ),
        cost_estimate=fused_cost,
    )(x3, w2, scale, shift)

    return out3.reshape(n, cout, h, w)  # free reshape back to NCHW


# --------------------------------------------------------------------------- #
# Reference + test
# --------------------------------------------------------------------------- #
def _reference(x_nchw, weight, bias, gamma, beta):
    # Plain-JAX reference of the same semantics (1x1 conv + train-mode BN + ReLU).
    y = jnp.einsum("nchw,oc->nohw", x_nchw, weight) + bias[None, :, None, None]
    mean = jnp.mean(y, axis=(0, 2, 3), keepdims=True)
    var = jnp.mean((y - mean) ** 2, axis=(0, 2, 3), keepdims=True)
    yhat = (y - mean) * jax.lax.rsqrt(var + EPS)
    return jnp.maximum(yhat * gamma[None, :, None, None] + beta[None, :, None, None], 0.0)


if __name__ == "__main__":
    key = jax.random.PRNGKey(0)
    k_x, k_w, k_b, k_g, k_be = jax.random.split(key, 5)

    N, Cin, H, W = 2, 4, 16, 16
    Cout = 8

    x = jax.random.normal(k_x, (N, Cin, H, W), dtype=jnp.float32)
    weight = jax.random.normal(k_w, (Cout, Cin), dtype=jnp.float32) * (1.0 / jnp.sqrt(Cin))
    bias = jax.random.normal(k_b, (Cout,), dtype=jnp.float32) * 0.1
    gamma = 1.0 + 0.1 * jax.random.normal(k_g, (Cout,), dtype=jnp.float32)
    beta = 0.1 * jax.random.normal(k_be, (Cout,), dtype=jnp.float32)

    out = conv_bn_relu(x, weight, bias, gamma, beta)
    out = jax.block_until_ready(out)

    ref = _reference(x, weight, bias, gamma, beta)
    assert out.shape == (N, Cout, H, W)
    assert jnp.allclose(out, ref, atol=2e-4, rtol=2e-4), "mismatch vs reference"

    print("KERNEL_OK")
</pallas_src>

<mosaic_0001>
module attributes {stable_mosaic.version = 11 : i64} {
  func.func @kernel(%arg0: i32, %arg1: i32, %arg2: memref<1x4x256xf32, #tpu.memory_space<vmem>>, %arg3: memref<1x4x1xf32, #tpu.memory_space<vmem>>, %arg4: memref<1x4x4xf32, #tpu.memory_space<vmem>>) attributes {dimension_semantics = [#tpu.dimension_semantics<parallel>, #tpu.dimension_semantics<arbitrary>], iteration_bounds = array<i64: 2, 1>, scalar_prefetch = 0 : i64, scratch_operands = 0 : i64, tpu.core_type = #tpu.core_type<tc>, window_params = [{transform_indices = @transform_0, window_bounds = array<i64: 1, 4, 256>}, {transform_indices = @transform_1, window_bounds = array<i64: 1, 4, 1>}, {transform_indices = @transform_2, window_bounds = array<i64: 1, 4, 4>}]} {
    %c0_i32 = arith.constant 0 : i32
    %0 = arith.cmpi eq, %arg1, %c0_i32 : i32
    %1 = arith.extui %0 : i1 to i32
    %c0_i32_0 = arith.constant 0 : i32
    %2 = arith.cmpi ne, %1, %c0_i32_0 : i32
    scf.if %2 {
      %cst_16 = arith.constant 0.000000e+00 : f32
      %20 = vector.broadcast %cst_16 : f32 to vector<1x4x1xf32>
      %c0_17 = arith.constant 0 : index
      %c0_18 = arith.constant 0 : index
      %c0_19 = arith.constant 0 : index
      %21 = vector.load %arg3[%c0_17, %c0_18, %c0_19] : memref<1x4x1xf32, #tpu.memory_space<vmem>>, vector<1x4x1xf32>
      tpu.vector_store %arg3[%c0_17, %c0_18, %c0_19], %20 {strides = array<i32>} : memref<1x4x1xf32, #tpu.memory_space<vmem>>, vector<1x4x1xf32>,
      %cst_20 = arith.constant 0.000000e+00 : f32
      %22 = vector.broadcast %cst_20 : f32 to vector<1x4x4xf32>
      %c0_21 = arith.constant 0 : index
      %c0_22 = arith.constant 0 : index
      %c0_23 = arith.constant 0 : index
      %23 = vector.load %arg4[%c0_21, %c0_22, %c0_23] : memref<1x4x4xf32, #tpu.memory_space<vmem>>, vector<1x4x4xf32>
      tpu.vector_store %arg4[%c0_21, %c0_22, %c0_23], %22 {strides = array<i32>} : memref<1x4x4xf32, #tpu.memory_space<vmem>>, vector<1x4x4xf32>,
    } else {
    }
    %c0 = arith.constant 0 : index
    %c0_1 = arith.constant 0 : index
    %c0_2 = arith.constant 0 : index
    %3 = vector.load %arg2[%c0, %c0_1, %c0_2] : memref<1x4x256xf32, #tpu.memory_space<vmem>>, vector<1x4x256xf32>
    %4 = vector.shape_cast %3 : vector<1x4x256xf32> to vector<4x256xf32>
    %c0_3 = arith.constant 0 : index
    %c0_4 = arith.constant 0 : index
    %c0_5 = arith.constant 0 : index
    %5 = vector.load %arg3[%c0_3, %c0_4, %c0_5] : memref<1x4x1xf32, #tpu.memory_space<vmem>>, vector<1x4x1xf32>
    %6 = vector.shape_cast %5 : vector<1x4x1xf32> to vector<4x1xf32>
    %cst = arith.constant dense<0.000000e+00> : vector<4xf32>
    %7 = vector.multi_reduction <add>, %4, %cst [1] : vector<4x256xf32> to vector<4xf32>
    %8 = vector.shape_cast %7 : vector<4xf32> to vector<4x1xf32>
    %9 = arith.addf %6, %8 : vector<4x1xf32>
    %c0_6 = arith.constant 0 : index
    %c0_7 = arith.constant 0 : index
    %c0_8 = arith.constant 0 : index
    %10 = vector.load %arg3[%c0_6, %c0_7, %c0_8] : memref<1x4x1xf32, #tpu.memory_space<vmem>>, vector<1x4x1xf32>
    %11 = vector.shape_cast %10 : vector<1x4x1xf32> to vector<4x1xf32>
    %12 = vector.shape_cast %9 : vector<4x1xf32> to vector<1x4x1xf32>
    tpu.vector_store %arg3[%c0_6, %c0_7, %c0_8], %12 {strides = array<i32>} : memref<1x4x1xf32, #tpu.memory_space<vmem>>, vector<1x4x1xf32>,
    %c0_9 = arith.constant 0 : index
    %c0_10 = arith.constant 0 : index
    %c0_11 = arith.constant 0 : index
    %13 = vector.load %arg4[%c0_9, %c0_10, %c0_11] : memref<1x4x4xf32, #tpu.memory_space<vmem>>, vector<1x4x4xf32>
    %14 = vector.shape_cast %13 : vector<1x4x4xf32> to vector<4x4xf32>
    %cst_12 = arith.constant dense<0.000000e+00> : vector<4x4xf32>
    %15 = tpu.matmul %4, %4, %cst_12 {dimension_numbers = #tpu.dot_dimension_numbers<[1], [1], [0], [0], [0, 0, 1, 0], [], []>} : vector<4x256xf32>, vector<4x256xf32>, vector<4x4xf32> -> vector<4x4xf32>
    %16 = arith.addf %14, %15 : vector<4x4xf32>
    %c0_13 = arith.constant 0 : index
    %c0_14 = arith.constant 0 : index
    %c0_15 = arith.constant 0 : index
    %17 = vector.load %arg4[%c0_13, %c0_14, %c0_15] : memref<1x4x4xf32, #tpu.memory_space<vmem>>, vector<1x4x4xf32>
    %18 = vector.shape_cast %17 : vector<1x4x4xf32> to vector<4x4xf32>
    %19 = vector.shape_cast %16 : vector<4x4xf32> to vector<1x4x4xf32>
    tpu.vector_store %arg4[%c0_13, %c0_14, %c0_15], %19 {strides = array<i32>} : memref<1x4x4xf32, #tpu.memory_space<vmem>>, vector<1x4x4xf32>,
    return
  }
  func.func @transform_0(%arg0: i32, %arg1: i32) -> (i32, i32, i32) {
    %c0_i32 = arith.constant 0 : i32
    %c0_i32_0 = arith.constant 0 : i32
    return %arg0, %c0_i32, %arg1 : i32, i32, i32
  }
  func.func @transform_1(%arg0: i32, %arg1: i32) -> (i32, i32, i32) {
    %c0_i32 = arith.constant 0 : i32
    %c0_i32_0 = arith.constant 0 : i32
    %c0_i32_1 = arith.constant 0 : i32
    return %arg0, %c0_i32, %c0_i32_0 : i32, i32, i32
  }
  func.func @transform_2(%arg0: i32, %arg1: i32) -> (i32, i32, i32) {
    %c0_i32 = arith.constant 0 : i32
    %c0_i32_0 = arith.constant 0 : i32
    %c0_i32_1 = arith.constant 0 : i32
    return %arg0, %c0_i32, %c0_i32_0 : i32, i32, i32
  }
}

</mosaic_0001>

<llo_original>
// kernel: tpu_custom_call.1
$region0: #{tpu_custom_call.1}
  #allocation0 [shape = 'u32[]', space=smem, size = 0x4, offset = 0x4, fixed_abs, tag = 'smem constant byte address 0x4 - core index']
  #allocation1 [shape = 'u32[72,128]{1,0:T(1,128)}', space=vmem, size = 0x9000, scoped, tag = 'internal scratch']
  %s0 = inlined_call_operand.hbm [shape: f32[2,4,256], index: 0, kind: input, shape index: {}]
  %s1 = inlined_call_operand.vmem [shape: f32[2,4,1], index: 1, kind: output, shape index: {0}]
  %s2 = inlined_call_operand.hbm [shape: f32[2,4,4], index: 2, kind: output, shape index: {1}]
  %3 = xla_tuple %s1, %s2
  %s4 = sld [smem:[#allocation0]]
  $region53: #{tpu_custom_call.1} parent=0
    _
  %s6 = ssub.s32 1, %s4
  %s7 = scalar_select 0, %s6, %s4
  $region1: #{tpu_custom_call.1} parent=0
    #allocation2 [shape = 'u8[8192]{0}', space=vmem, size = 0x2000, scoped, tag = 'input window, operand 0']
    #allocation3 [shape = 's32[2]{0}', space=sflag, size = 0x8, scoped, tag = 'scoped memory for tpu_custom_call.1']
    #allocation4 [shape = 's32[2]{0}', space=sflag, size = 0x8, scoped, tag = 'scoped memory for tpu_custom_call.1']
    #allocation5 [shape = 'u8[4096]{0}', space=vmem, size = 0x1000, scoped, tag = 'output window, operand 1']
    %8 = vsyncpa [#allocation3], 0
    %s9 = scalar_lea.sflag [#allocation3], 1
    %10 = vsyncpa %s9, 0
    %11 = vsyncpa [#allocation4], 0
    %s12 = scalar_lea.sflag [#allocation4], 1
    %13 = vsyncpa %s12, 0
    loop: start=0, step=1, limit=4
    $region2: #{tpu_custom_call.1} parent=1 // loop_pre_header
      _
    $region3: #{tpu_custom_call.1} parent=1 // loop_header
      %s15 = sphi 0, %s19
      %p16 = scmp.ge.s32.totalorder %s15, 4
      %s22 = sphi 0, %s34
      %s23 = sphi 0, %s30
      %s24 = sphi 0, %s22
      %s25 = sphi 0, %s23
      %s26 = sphi 0, %s24
      %s27 = sphi 0, %s25
      %s39 = sphi 0, %s41
      %s42 = sphi 0, %s39
      %s43 = sphi 0, %s42
      %s59 = sphi 0, %s43
      %s65 = sphi 0, %s67
      %s68 = sphi 0, %s65
      %s69 = sphi 0, %s68
      %s85 = sphi 0, %s69
      %s91 = sphi 0, %s93
      %s94 = sphi 0, %s91
      %s95 = sphi 0, %s94
      %s111 = sphi 0, %s95
    $region4: #{tpu_custom_call.1} parent=1 // loop_header_branch
      %18 = sbr.rel (%p16) target = $region8
    $region5: #{tpu_custom_call.1} parent=1 // loop_body
      %s20 = ssub.s32 %s15, 1
      %s21 = ssub.s32 %s15, 2
      %s28 = sadd.s32 1, %s23
      %p29 = scmp.ge.s32.totalorder %s28, 1
      %s30 = scalar_select %p29, 0, %s28
      %s31 = sadd.s32 1, %s22
      %s32 = scalar_select %p29, %s31, %s22
      %p33 = scmp.ge.s32.totalorder %s32, 2
      %s34 = scalar_select %p33, 0, %s32
      %s35 = ssub.s32 %s22, %s34
      %s36 = ssub.s32 %s23, %s30
      %s37 = sor.u32 %s35, %s36
      %p38 = scmp.eq.s32.totalorder %s37, 0
      %s40 = sadd.s32 %s39, 1
      %s41 = scalar_select %p38, %s39, %s40
      %p44 = pneg %p38
      %p45 = scmp.eq.s32.totalorder %s15, 1
      %p46 = por %p44, %p45
      %p47 = scmp.ne.s32.totalorder %s39, %s42
      %p48 = scmp.eq.s32.totalorder %s15, 0
      %p49 = por %p47, %p48
      %p50 = scmp.ne.s32.totalorder %s39, %s42
      %p51 = scmp.eq.s32.totalorder %s20, 1
      %p52 = por %p50, %p51
      %p53 = scmp.ne.s32.totalorder %s42, %s43
      %p54 = scmp.eq.s32.totalorder %s20, 0
      %p55 = por %p53, %p54
      %p56 = scmp.ne.s32.totalorder %s42, %s43
      %p57 = scmp.eq.s32.totalorder %s21, 1
      %p58 = por %p56, %p57
      %p60 = scmp.ne.s32.totalorder %s43, %s59
      %p61 = scmp.eq.s32.totalorder %s21, 0
      %p62 = por %p60, %p61
      %s63 = ssub.s32 %s22, %s34
      %p64 = scmp.eq.s32.totalorder %s63, 0
      %s66 = sadd.s32 %s65, 1
      %s67 = scalar_select %p64, %s65, %s66
      %p70 = pneg %p64
      %p71 = scmp.eq.s32.totalorder %s15, 1
      %p72 = por %p70, %p71
      %p73 = scmp.ne.s32.totalorder %s65, %s68
      %p74 = scmp.eq.s32.totalorder %s15, 0
      %p75 = por %p73, %p74
      %p76 = scmp.ne.s32.totalorder %s65, %s68
      %p77 = scmp.eq.s32.totalorder %s20, 1
      %p78 = por %p76, %p77
      %p79 = scmp.ne.s32.totalorder %s68, %s69
      %p80 = scmp.eq.s32.totalorder %s20, 0
      %p81 = por %p79, %p80
      %p82 = scmp.ne.s32.totalorder %s68, %s69
      %p83 = scmp.eq.s32.totalorder %s21, 1
      %p84 = por %p82, %p83
      %p86 = scmp.ne.s32.totalorder %s69, %s85
      %p87 = scmp.eq.s32.totalorder %s21, 0
      %p88 = por %p86, %p87
      %s89 = ssub.s32 %s22, %s34
      %p90 = scmp.eq.s32.totalorder %s89, 0
      %s92 = sadd.s32 %s91, 1
      %s93 = scalar_select %p90, %s91, %s92
      %p96 = pneg %p90
      %p97 = scmp.eq.s32.totalorder %s15, 1
      %p98 = por %p96, %p97
      %p99 = scmp.ne.s32.totalorder %s91, %s94
      %p100 = scmp.eq.s32.totalorder %s15, 0
      %p101 = por %p99, %p100
      %p102 = scmp.ne.s32.totalorder %s91, %s94
      %p103 = scmp.eq.s32.totalorder %s20, 1
      %p104 = por %p102, %p103
      %p105 = scmp.ne.s32.totalorder %s94, %s95
      %p106 = scmp.eq.s32.totalorder %s20, 0
      %p107 = por %p105, %p106
      %p108 = scmp.ne.s32.totalorder %s94, %s95
      %p109 = scmp.eq.s32.totalorder %s21, 1
      %p110 = por %p108, %p109
      %p112 = scmp.ne.s32.totalorder %s95, %s111
      %p113 = scmp.eq.s32.totalorder %s21, 0
      %p114 = por %p112, %p113
      %p115 = scmp.le.s32.totalorder 1, %s15
      %p116 = scmp.lt.s32.totalorder %s15, 3
      %p117 = pnand %p115, %p116
      %p118 = pneg %p117
      // Predicated region
      $region9: #{tpu_custom_call.1} parent=5 // pred_check
        _
      $region10: #{tpu_custom_call.1} parent=5 // pred_check_branch
        %120 = sbr.rel (%p117) target = $region12
      $region11: #{tpu_custom_call.1} parent=5 // pred_region
        %s121 = ssub.s32 %s15, 1
      $region12: #{tpu_custom_call.1} parent=5 // pred_fallthru
        _
      %p122 = scmp.lt.s32.totalorder %s15, 2
      // Predicated region
      $region13: #{tpu_custom_call.1} parent=5 // pred_check
        %p123 = pneg %p122
      $region14: #{tpu_custom_call.1} parent=5 // pred_check_branch
        %125 = sbr.rel (%p123) target = $region16
      $region15: #{tpu_custom_call.1} parent=5 // pred_region
        // Predicated region
        $region17: #{tpu_custom_call.1} parent=15 // pred_check
          %p126 = pneg %p49
        $region18: #{tpu_custom_call.1} parent=15 // pred_check_branch
          %128 = sbr.rel (%p126) target = $region20
        $region19: #{tpu_custom_call.1} parent=15 // pred_region
          %s129 = sand.u32 %s39, 1
          %s130 = scalar_lea.sflag [#allocation3], %s129
          %s131 = sand.u32 %s39, 1
          %s132 = smul.addr %s131, 8
          %s133 = scalar_lea.vmem [#allocation2], %s132
          %s134 = smul.u32 2, %s23
          %136 = vsyncadd %s130, 0
          %s137 = smul.addr %s22, 2
          %s138 = sadd.s32 %s134, %s137
          %s139 = smul.addr %s138, 4
          %s140 = scalar_lea.hbm %s0, %s139
          %s142 = sshll.u32 %s140, 4
          %s143 = int_to_ptr.hbm [resolvable:$true] %s142
          %s144 = sshll.u32 %s133, 4
          %s145 = int_to_ptr.vmem [resolvable:$true] %s144
          %147 = dma.hbm_to_vmem [thread:$0]  %s143, 128, %s145, %s130
        $region20: #{tpu_custom_call.1} parent=15 // pred_fallthru
          _
      $region16: #{tpu_custom_call.1} parent=5 // pred_fallthru
        _
      %p148 = scmp.le.s32.totalorder 1, %s15
      %p149 = scmp.lt.s32.totalorder %s15, 3
      %p150 = pnand %p148, %p149
      %p151 = pneg %p150
      // Predicated region
      $region21: #{tpu_custom_call.1} parent=5 // pred_check
        _
      $region22: #{tpu_custom_call.1} parent=5 // pred_check_branch
        %153 = sbr.rel (%p150) target = $region24
      $region23: #{tpu_custom_call.1} parent=5 // pred_region
        %s154 = ssub.s32 %s15, 1
        %s155 = sand.u32 %s42, 1
        %s156 = scalar_lea.sflag [#allocation3], %s155
        %s157 = sand.u32 %s42, 1
        %s158 = smul.addr %s157, 8
        %s159 = scalar_lea.vmem [#allocation2], %s158
        // Predicated region
        $region25: #{tpu_custom_call.1} parent=23 // pred_check
          %p160 = pneg %p55
        $region26: #{tpu_custom_call.1} parent=23 // pred_check_branch
          %162 = sbr.rel (%p160) target = $region28
        $region27: #{tpu_custom_call.1} parent=23 // pred_region
          %164 = dma.done %s156, 128
        $region28: #{tpu_custom_call.1} parent=23 // pred_fallthru
          _
        %s165 = sand.u32 %s42, 1
        %s166 = scalar_lea.sflag [#allocation3], %s165
        %s167 = sand.u32 %s42, 1
        %s168 = smul.addr %s167, 8
        %s169 = scalar_lea.vmem [#allocation2], %s168
        %p170 = pneg %p55
        %p171 = pneg %p52
        %p172 = pneg %p81
        %p173 = pneg %p78
        %p174 = scmp.lt.s32.totalorder %s24, 1
        %s175 = scalar_select %p174, %s24, 1
        %s176 = smul.addr %s175, 4
        %s177 = scalar_lea.vmem %s1, %s176
        %p178 = pneg %p107
        %p179 = pneg %p104
        %s180 = sand.u32 %s94, 1
        %s181 = scalar_lea.sflag [#allocation4], %s180
        %s182 = sand.u32 %s94, 1
        %s183 = smul.addr %s182, 4
        %s184 = scalar_lea.vmem [#allocation5], %s183
        %s185 = smul.u32 2, %s25
        %p186 = scmp.lt.s32.totalorder %s24, 1
        %s187 = scalar_select %p186, %s24, 1
        %s188 = smul.addr %s187, 4
        %s189 = scalar_lea.vmem %s1, %s188
        %p190 = scmp.eq.s32.totalorder %s25, 0
        // Predicated region
        $region29: #{tpu_custom_call.1} parent=23 // pred_check
          %p191 = pneg %p190
        $region30: #{tpu_custom_call.1} parent=23 // pred_check_branch
          %193 = sbr.rel (%p191) target = $region32
        $region31: #{tpu_custom_call.1} parent=23 // pred_region
          %vm194 = vcmask 3072
          %195 = vst.msk [vmem:[%s189] sm:$0xf] %vm194, 0.0
          %vm196 = vcmask 27648
          %197 = vst.msk [vmem:[%s184] sm:$0xf] %vm196, 0.0
        $region32: #{tpu_custom_call.1} parent=23 // pred_fallthru
          _
        %v198 = vld [vmem:[%s159] sm:$0xff]
        %v199 = vld [vmem:[%s189] sm:$0xf]
        %201 = vst [vmem:[#allocation1] ss:$2 sm:$0xff] %v198
        %v202 = vld.sshfl [vmem:[#allocation1] sm:$0xff pattern:$0x75316420]
        %v203 = vld.sshfl [vmem:[#allocation1 + $0x8] sm:$0xff pattern:$0x75316420]
        %vm206 = vcmask 1043456
        %v207 = vsel %vm206, %v202, 0.0
        %v208 = vsel %vm206, %v203, 0.0
        %v209 = vadd.f32 %v207, %v208
        %210 = vadd.xlane.f32.xlu0 %v209
        %v211 = vpop.xlane.xlu0 %210
        %v212 = vadd.f32 %v199, %v211
        %vm213 = vcmask 3072
        %214 = vst.msk [vmem:[%s189] sm:$0xf] %vm213, %v212
        %v215 = vld [vmem:[%s184] sm:$0xf]
        %216 = vst [vmem:[#allocation1] ss:$2 sm:$0xff] %v198
        %v217 = vld.sshfl [vmem:[#allocation1] sm:$0xff pattern:$0x75316420]
        %v218 = vld.sshfl [vmem:[#allocation1 + $0x8] sm:$0xff pattern:$0x75316420]
        %221 = vst [vmem:[#allocation1] ss:$2 sm:$0xff] %v198
        %v222 = vld.sshfl [vmem:[#allocation1] sm:$0xff pattern:$0x75316420]
        %v223 = vld.sshfl [vmem:[#allocation1 + $0x8] sm:$0xff pattern:$0x75316420]
        %226 = vmatpush.xpose.msra.mxu0 0.0
        %227 = vmatpush.xpose.msra.mxu0 0.0
        %228 = vmatpush.xpose.msra.mxu0 0.0
        %229 = vmatpush.xpose.msra.mxu0 0.0
        %230 = vmatpush.xpose.msra.mxu0 0.0
        %231 = vmatpush.xpose.msra.mxu0 0.0
        %232 = vmatpush.xpose.msra.mxu0 0.0
        %233 = vmatpush.xpose.msra.mxu0 0.0
        %234 = vmatpush.xpose.msra.mxu0 0.0
        %235 = vmatpush.xpose.msra.mxu0 0.0
        %236 = vmatpush.xpose.msra.mxu0 0.0
        %237 = vmatpush.xpose.msra.mxu0 0.0
        %238 = vmatpush.xpose.msra.mxu0 0.0
        %239 = vmatpush.xpose.msra.mxu0 0.0
        %240 = vmatpush.xpose.msra.mxu0 0.0
        %241 = vmatpush.xpose.msra.mxu0 %v222
        %242 = vmatmul.f32.gmra.mxu0 %v217
        %v243 = vpop.f32.mrf.mxu0
        %v244 = vadd.f32 0.0, %v243
        %245 = vdwg.mxu0
        %246 = vmatpush.xpose.msra.mxu0 0.0
        %247 = vmatpush.xpose.msra.mxu0 0.0
        %248 = vmatpush.xpose.msra.mxu0 0.0
        %249 = vmatpush.xpose.msra.mxu0 0.0
        %250 = vmatpush.xpose.msra.mxu0 0.0
        %251 = vmatpush.xpose.msra.mxu0 0.0
        %252 = vmatpush.xpose.msra.mxu0 0.0
        %253 = vmatpush.xpose.msra.mxu0 0.0
        %254 = vmatpush.xpose.msra.mxu0 0.0
        %255 = vmatpush.xpose.msra.mxu0 0.0
        %256 = vmatpush.xpose.msra.mxu0 0.0
        %257 = vmatpush.xpose.msra.mxu0 0.0
        %258 = vmatpush.xpose.msra.mxu0 0.0
        %259 = vmatpush.xpose.msra.mxu0 0.0
        %260 = vmatpush.xpose.msra.mxu0 0.0
        %261 = vmatpush.xpose.msra.mxu0 %v223
        %262 = vmatmul.f32.gmra.mxu0 %v218
        %v263 = vpop.f32.mrf.mxu0
        %v264 = vadd.f32 %v244, %v263
        %265 = vdwg.mxu0
        %v266 = vadd.f32 %v215, %v264
        %vm267 = vcmask 27648
        %268 = vst.msk [vmem:[%s184] sm:$0xf] %vm267, %v266
        %p269 = scmp.lt.s32.totalorder %s24, 1
        %s270 = scalar_select %p269, %s24, 1
        %s271 = smul.addr %s270, 4
        %s272 = scalar_lea.vmem %s1, %s271
        %s273 = sand.u32 %s94, 1
        %s274 = scalar_lea.sflag [#allocation4], %s273
        %s275 = sand.u32 %s94, 1
        %s276 = smul.addr %s275, 4
        %s277 = scalar_lea.vmem [#allocation5], %s276
        // Predicated region
        $region33: #{tpu_custom_call.1} parent=23 // pred_check
          %p278 = pneg %p78
        $region34: #{tpu_custom_call.1} parent=23 // pred_check_branch
          %280 = sbr.rel (%p278) target = $region36
        $region35: #{tpu_custom_call.1} parent=23 // pred_region
          _
        $region36: #{tpu_custom_call.1} parent=23 // pred_fallthru
          _
        // Predicated region
        $region37: #{tpu_custom_call.1} parent=23 // pred_check
          %p281 = pneg %p104
        $region38: #{tpu_custom_call.1} parent=23 // pred_check_branch
          %283 = sbr.rel (%p281) target = $region40
        $region39: #{tpu_custom_call.1} parent=23 // pred_region
          %285 = vsyncadd %s274, 0
          %s286 = smul.addr %s24, 4
          %s287 = scalar_lea.hbm %s2, %s286
          %s289 = sshll.u32 %s277, 4
          %s290 = int_to_ptr.vmem [resolvable:$true] %s289
          %s291 = sshll.u32 %s287, 4
          %s292 = int_to_ptr.hbm [resolvable:$true] %s291
          %294 = dma.vmem_to_hbm [thread:$0]  %s290, 64, %s292, %s274
        $region40: #{tpu_custom_call.1} parent=23 // pred_fallthru
          _
      $region24: #{tpu_custom_call.1} parent=5 // pred_fallthru
        _
      %p295 = scmp.le.s32.totalorder 2, %s15
      // Predicated region
      $region41: #{tpu_custom_call.1} parent=5 // pred_check
        %p296 = pneg %p295
      $region42: #{tpu_custom_call.1} parent=5 // pred_check_branch
        %298 = sbr.rel (%p296) target = $region44
      $region43: #{tpu_custom_call.1} parent=5 // pred_region
        %s299 = ssub.s32 %s15, 2
        // Predicated region
        $region45: #{tpu_custom_call.1} parent=43 // pred_check
          %p300 = pneg %p84
        $region46: #{tpu_custom_call.1} parent=43 // pred_check_branch
          %302 = sbr.rel (%p300) target = $region48
        $region47: #{tpu_custom_call.1} parent=43 // pred_region
          %p303 = scmp.lt.s32.totalorder %s26, 1
          %s304 = scalar_select %p303, %s26, 1
          %s305 = smul.addr %s304, 4
          %s306 = scalar_lea.vmem %s1, %s305
        $region48: #{tpu_custom_call.1} parent=43 // pred_fallthru
          _
        // Predicated region
        $region49: #{tpu_custom_call.1} parent=43 // pred_check
          %p307 = pneg %p110
        $region50: #{tpu_custom_call.1} parent=43 // pred_check_branch
          %309 = sbr.rel (%p307) target = $region52
        $region51: #{tpu_custom_call.1} parent=43 // pred_region
          %s310 = sand.u32 %s95, 1
          %s311 = scalar_lea.sflag [#allocation4], %s310
          %s312 = sand.u32 %s95, 1
          %s313 = smul.addr %s312, 4
          %s314 = scalar_lea.vmem [#allocation5], %s313
          %316 = dma.done %s311, 64
        $region52: #{tpu_custom_call.1} parent=43 // pred_fallthru
          _
      $region44: #{tpu_custom_call.1} parent=5 // pred_fallthru
        _
    $region6: #{tpu_custom_call.1} parent=1 // loop_footer
      %s19 = sadd.s32 1, %s15
    $region7: #{tpu_custom_call.1} parent=1 // loop_footer_branch
      %14 = sbr.rel target = $region3
    $region8: #{tpu_custom_call.1} parent=1 // loop_exit
      _
    %317 = vsyncpa [#allocation3], 1
    %s318 = scalar_lea.sflag [#allocation3], 1
    %319 = vsyncpa %s318, 1
    %320 = vsyncpa [#allocation4], 1
    %s321 = scalar_lea.sflag [#allocation4], 1
    %322 = vsyncpa %s321, 1

</llo_original>
